<compile_context>
chip_gen: v6e
topology: v6e:2x2x1
jax: 0.10.0
libtpu: 0.0.40
codegen_flags: <defaults>
</compile_context>

<pallas_src>
import functools

import jax
import jax.numpy as jnp
from jax.experimental import pallas as pl
from jax.experimental.pallas import tpu as pltpu

_MIB = 1024 * 1024


def _add_concat_kernel(e1, e2, e3, e4, d1, d2, d3, d4, o_ref, *, c, branch_out):
    """Inputs: (nb, C, ...) blocks.  Output: (nb, 4C, ...) or (nb, 4, C, ...)."""
    xs = (e1[...] + d1[...], e2[...] + d2[...],
          e3[...] + d3[...], e4[...] + d4[...])
    if branch_out:
        # Output block (nb, 4, C, t): each branch index owns its own sublane
        # tiles, so every store is a full-slab store (no vst.msk RMW, no
        # cross-sublane shifts even when C < sublane packing).
        for k, x in enumerate(xs):
            o_ref[:, k] = x
    else:
        # Channel slices land on whole (sublane, lane) tiles (C aligned to the
        # sublane packing, or the sublane dim is spatial in the 4-D view).
        for k, x in enumerate(xs):
            o_ref[:, k * c:(k + 1) * c] = x


def _chip_params():
    """(vmem_budget_bytes, vmem_limit_bytes, num_tensorcores) per generation."""
    try:
        info = pltpu.get_tpu_info()
        vmem_cap = int(getattr(info, "vmem_capacity_bytes", 64 * _MIB))
    except Exception:
        vmem_cap = 64 * _MIB  # conservative fallback
    if vmem_cap <= 64 * _MIB:
        # v7x: 64 MiB physical VMEM per TC, 2 TensorCores sharing HBM.
        return 24 * _MIB, 32 * _MIB, 2
    # v5e / v6e: 128 MiB VMEM, single TensorCore.
    return 56 * _MIB, 96 * _MIB, 1


def _plan(n, c, h, w, itemsize, sublane_pack, budget, num_cores):
    """Pick (view, batch_block, spatial_tile) under the VMEM budget."""
    hw = h * w
    c_pad = -(-c // sublane_pack) * sublane_pack  # VMEM sublane padding

    def fits(nb, spatial):
        # 8 input blocks (nb, C, spatial) + 1 output block (nb, 4C, spatial),
        # sublane-padded, x2 pipeline buffers.
        return 24 * c_pad * nb * spatial * itemsize <= budget

    def divisors_desc(x):
        return [d for d in range(x, 0, -1) if x % d == 0]

    lane_ok = hw % 128 == 0
    t_cands = ([t for t in divisors_desc(hw) if t % 128 == 0]
               if lane_ok else [hw])
    t = next((tc for tc in t_cands if fits(1, tc)), None)

    if t is not None:
        # Flattened (N, C, H*W) view: each input DMA is one contiguous chunk.
        nb = next(d for d in divisors_desc(n) if fits(d, t))
        # Multi-TC chips (v7x): keep >= num_cores grid steps so every core
        # streams.  Single-TC chips keep the largest block (grid = serial loop).
        while (n // nb) * (hw // t) < num_cores:
            if nb > 1:
                nb = next(d for d in divisors_desc(n) if d < nb)
            else:
                smaller = [x for x in t_cands if x < t]
                if not smaller:
                    break
                t = smaller[0]
        return "flat", nb, t

    # HW not 128-divisible and a full-HW block does not fit the budget:
    # keep W contiguous (full lanes) and tile H in sublane-aligned chunks.
    th_cands = [x for x in divisors_desc(h) if x % 8 == 0] or [h]
    th = next((x for x in th_cands if fits(1, x * w)), th_cands[-1])
    nb = next((d for d in divisors_desc(n) if fits(d, th * w)), 1)
    return "rows", nb, th


def concat_forward(e1, e2, e3, e4, d1, d2, d3, d4):
    """Returns cat([e1+d1, e2+d2, e3+d3, e4+d4], axis=1) for NCHW inputs."""
    inputs = (e1, e2, e3, e4, d1, d2, d3, d4)
    n, c, h, w = e1.shape
    dtype = e1.dtype
    for x in inputs:
        if x.shape != (n, c, h, w):
            raise ValueError(f"shape mismatch: {x.shape} vs {(n, c, h, w)}")
        if x.dtype != dtype:
            raise ValueError(f"dtype mismatch: {x.dtype} vs {dtype}")

    itemsize = dtype.itemsize
    sublane_pack = max(8, 32 // itemsize)  # 8 f32 / 16 bf16 / 32 int8
    budget, vmem_limit, num_cores = _chip_params()
    view, nb, tile = _plan(n, c, h, w, itemsize, sublane_pack, budget, num_cores)

    hw = h * w
    channel_aligned = (c % sublane_pack == 0)

    if view == "flat":
        operands = [x.reshape(n, c, hw) for x in inputs]
        in_spec = pl.BlockSpec((nb, c, tile), lambda b, j: (b, 0, j))
        grid = (n // nb, hw // tile)
        if channel_aligned:
            branch_out = False
            out_shape = jax.ShapeDtypeStruct((n, 4 * c, hw), dtype)
            out_spec = pl.BlockSpec((nb, 4 * c, tile), lambda b, j: (b, 0, j))
        else:
            # (N, 4, C, HW): every branch gets its own tile group so stores
            # are full-slab; row-major layout equals (N, 4C, H, W).
            branch_out = True
            out_shape = jax.ShapeDtypeStruct((n, 4, c, hw), dtype)
            out_spec = pl.BlockSpec((nb, 4, c, tile), lambda b, j: (b, 0, 0, j))
    else:  # "rows": HW not 128-divisible and too large for one block
        operands = list(inputs)
        branch_out = False  # sublane dim is the H-tile; channel slices are full-tile
        in_spec = pl.BlockSpec((nb, c, tile, w), lambda b, j: (b, 0, j, 0))
        out_shape = jax.ShapeDtypeStruct((n, 4 * c, h, w), dtype)
        out_spec = pl.BlockSpec((nb, 4 * c, tile, w), lambda b, j: (b, 0, j, 0))
        grid = (n // nb, h // tile)

    out = pl.pallas_call(
        functools.partial(_add_concat_kernel, c=c, branch_out=branch_out),
        out_shape=out_shape,
        grid_spec=pltpu.PrefetchScalarGridSpec(
            num_scalar_prefetch=0,
            grid=grid,
            in_specs=[in_spec] * 8,
            out_specs=out_spec,
        ),
        compiler_params=pltpu.CompilerParams(
            dimension_semantics=("parallel", "parallel"),
            vmem_limit_bytes=vmem_limit,
        ),
    )(*operands)

    return out.reshape(n, 4 * c, h, w)


def _reference(e1, e2, e3, e4, d1, d2, d3, d4):
    return jnp.concatenate([e1 + d1, e2 + d2, e3 + d3, e4 + d4], axis=1)


if __name__ == "__main__":
    key = jax.random.PRNGKey(0)
    N, C, H, W = 2, 4, 16, 16
    keys = jax.random.split(key, 8)
    tensors = [
        jax.random.normal(k, (N, C, H, W), dtype=jnp.float32) for k in keys
    ]
    e1, e2, e3, e4, d1, d2, d3, d4 = tensors

    out = concat_forward(e1, e2, e3, e4, d1, d2, d3, d4)
    jax.block_until_ready(out)

    ref = _reference(e1, e2, e3, e4, d1, d2, d3, d4)
    assert out.shape == (N, 4 * C, H, W), out.shape
    assert jnp.allclose(out, ref, atol=1e-6, rtol=1e-6), "mismatch vs reference"

    print("KERNEL_OK")
</pallas_src>

<mosaic_0001>
module attributes {stable_mosaic.version = 11 : i64} {
  func.func @_add_concat_kernel(%arg0: i32, %arg1: i32, %arg2: memref<1x4x256xf32, #tpu.memory_space<vmem>>, %arg3: memref<1x4x256xf32, #tpu.memory_space<vmem>>, %arg4: memref<1x4x256xf32, #tpu.memory_space<vmem>>, %arg5: memref<1x4x256xf32, #tpu.memory_space<vmem>>, %arg6: memref<1x4x256xf32, #tpu.memory_space<vmem>>, %arg7: memref<1x4x256xf32, #tpu.memory_space<vmem>>, %arg8: memref<1x4x256xf32, #tpu.memory_space<vmem>>, %arg9: memref<1x4x256xf32, #tpu.memory_space<vmem>>, %arg10: memref<1x4x4x256xf32, #tpu.memory_space<vmem>>) attributes {dimension_semantics = [#tpu.dimension_semantics<parallel>, #tpu.dimension_semantics<parallel>], iteration_bounds = array<i64: 2, 1>, scalar_prefetch = 0 : i64, scratch_operands = 0 : i64, tpu.core_type = #tpu.core_type<tc>, window_params = [{transform_indices = @transform_0, window_bounds = array<i64: 1, 4, 256>}, {transform_indices = @transform_1, window_bounds = array<i64: 1, 4, 256>}, {transform_indices = @transform_2, window_bounds = array<i64: 1, 4, 256>}, {transform_indices = @transform_3, window_bounds = array<i64: 1, 4, 256>}, {transform_indices = @transform_4, window_bounds = array<i64: 1, 4, 256>}, {transform_indices = @transform_5, window_bounds = array<i64: 1, 4, 256>}, {transform_indices = @transform_6, window_bounds = array<i64: 1, 4, 256>}, {transform_indices = @transform_7, window_bounds = array<i64: 1, 4, 256>}, {transform_indices = @transform_8, window_bounds = array<i64: 1, 4, 4, 256>}]} {
    %c0 = arith.constant 0 : index
    %c0_0 = arith.constant 0 : index
    %c0_1 = arith.constant 0 : index
    %0 = vector.load %arg2[%c0, %c0_0, %c0_1] : memref<1x4x256xf32, #tpu.memory_space<vmem>>, vector<1x4x256xf32>
    %c0_2 = arith.constant 0 : index
    %c0_3 = arith.constant 0 : index
    %c0_4 = arith.constant 0 : index
    %1 = vector.load %arg6[%c0_2, %c0_3, %c0_4] : memref<1x4x256xf32, #tpu.memory_space<vmem>>, vector<1x4x256xf32>
    %2 = arith.addf %0, %1 : vector<1x4x256xf32>
    %c0_5 = arith.constant 0 : index
    %c0_6 = arith.constant 0 : index
    %c0_7 = arith.constant 0 : index
    %3 = vector.load %arg3[%c0_5, %c0_6, %c0_7] : memref<1x4x256xf32, #tpu.memory_space<vmem>>, vector<1x4x256xf32>
    %c0_8 = arith.constant 0 : index
    %c0_9 = arith.constant 0 : index
    %c0_10 = arith.constant 0 : index
    %4 = vector.load %arg7[%c0_8, %c0_9, %c0_10] : memref<1x4x256xf32, #tpu.memory_space<vmem>>, vector<1x4x256xf32>
    %5 = arith.addf %3, %4 : vector<1x4x256xf32>
    %c0_11 = arith.constant 0 : index
    %c0_12 = arith.constant 0 : index
    %c0_13 = arith.constant 0 : index
    %6 = vector.load %arg4[%c0_11, %c0_12, %c0_13] : memref<1x4x256xf32, #tpu.memory_space<vmem>>, vector<1x4x256xf32>
    %c0_14 = arith.constant 0 : index
    %c0_15 = arith.constant 0 : index
    %c0_16 = arith.constant 0 : index
    %7 = vector.load %arg8[%c0_14, %c0_15, %c0_16] : memref<1x4x256xf32, #tpu.memory_space<vmem>>, vector<1x4x256xf32>
    %8 = arith.addf %6, %7 : vector<1x4x256xf32>
    %c0_17 = arith.constant 0 : index
    %c0_18 = arith.constant 0 : index
    %c0_19 = arith.constant 0 : index
    %9 = vector.load %arg5[%c0_17, %c0_18, %c0_19] : memref<1x4x256xf32, #tpu.memory_space<vmem>>, vector<1x4x256xf32>
    %c0_20 = arith.constant 0 : index
    %c0_21 = arith.constant 0 : index
    %c0_22 = arith.constant 0 : index
    %10 = vector.load %arg9[%c0_20, %c0_21, %c0_22] : memref<1x4x256xf32, #tpu.memory_space<vmem>>, vector<1x4x256xf32>
    %11 = arith.addf %9, %10 : vector<1x4x256xf32>
    %c0_23 = arith.constant 0 : index
    %c0_24 = arith.constant 0 : index
    %c0_25 = arith.constant 0 : index
    %c0_26 = arith.constant 0 : index
    %12 = vector.load %arg10[%c0_23, %c0_24, %c0_25, %c0_26] : memref<1x4x4x256xf32, #tpu.memory_space<vmem>>, vector<1x1x4x256xf32>
    %13 = vector.shape_cast %12 : vector<1x1x4x256xf32> to vector<1x4x256xf32>
    %14 = vector.shape_cast %2 : vector<1x4x256xf32> to vector<1x1x4x256xf32>
    tpu.vector_store %arg10[%c0_23, %c0_24, %c0_25, %c0_26], %14 {strides = array<i32>} : memref<1x4x4x256xf32, #tpu.memory_space<vmem>>, vector<1x1x4x256xf32>,
    %c0_27 = arith.constant 0 : index
    %c1 = arith.constant 1 : index
    %c0_28 = arith.constant 0 : index
    %c0_29 = arith.constant 0 : index
    %15 = vector.load %arg10[%c0_27, %c1, %c0_28, %c0_29] : memref<1x4x4x256xf32, #tpu.memory_space<vmem>>, vector<1x1x4x256xf32>
    %16 = vector.shape_cast %15 : vector<1x1x4x256xf32> to vector<1x4x256xf32>
    %17 = vector.shape_cast %5 : vector<1x4x256xf32> to vector<1x1x4x256xf32>
    tpu.vector_store %arg10[%c0_27, %c1, %c0_28, %c0_29], %17 {strides = array<i32>} : memref<1x4x4x256xf32, #tpu.memory_space<vmem>>, vector<1x1x4x256xf32>,
    %c0_30 = arith.constant 0 : index
    %c2 = arith.constant 2 : index
    %c0_31 = arith.constant 0 : index
    %c0_32 = arith.constant 0 : index
    %18 = vector.load %arg10[%c0_30, %c2, %c0_31, %c0_32] : memref<1x4x4x256xf32, #tpu.memory_space<vmem>>, vector<1x1x4x256xf32>
    %19 = vector.shape_cast %18 : vector<1x1x4x256xf32> to vector<1x4x256xf32>
    %20 = vector.shape_cast %8 : vector<1x4x256xf32> to vector<1x1x4x256xf32>
    tpu.vector_store %arg10[%c0_30, %c2, %c0_31, %c0_32], %20 {strides = array<i32>} : memref<1x4x4x256xf32, #tpu.memory_space<vmem>>, vector<1x1x4x256xf32>,
    %c0_33 = arith.constant 0 : index
    %c3 = arith.constant 3 : index
    %c0_34 = arith.constant 0 : index
    %c0_35 = arith.constant 0 : index
    %21 = vector.load %arg10[%c0_33, %c3, %c0_34, %c0_35] : memref<1x4x4x256xf32, #tpu.memory_space<vmem>>, vector<1x1x4x256xf32>
    %22 = vector.shape_cast %21 : vector<1x1x4x256xf32> to vector<1x4x256xf32>
    %23 = vector.shape_cast %11 : vector<1x4x256xf32> to vector<1x1x4x256xf32>
    tpu.vector_store %arg10[%c0_33, %c3, %c0_34, %c0_35], %23 {strides = array<i32>} : memref<1x4x4x256xf32, #tpu.memory_space<vmem>>, vector<1x1x4x256xf32>,
    return
  }
  func.func @transform_0(%arg0: i32, %arg1: i32) -> (i32, i32, i32) {
    %c0_i32 = arith.constant 0 : i32
    %c0_i32_0 = arith.constant 0 : i32
    return %arg0, %c0_i32, %arg1 : i32, i32, i32
  }
  func.func @transform_1(%arg0: i32, %arg1: i32) -> (i32, i32, i32) {
    %c0_i32 = arith.constant 0 : i32
    %c0_i32_0 = arith.constant 0 : i32
    return %arg0, %c0_i32, %arg1 : i32, i32, i32
  }
  func.func @transform_2(%arg0: i32, %arg1: i32) -> (i32, i32, i32) {
    %c0_i32 = arith.constant 0 : i32
    %c0_i32_0 = arith.constant 0 : i32
    return %arg0, %c0_i32, %arg1 : i32, i32, i32
  }
  func.func @transform_3(%arg0: i32, %arg1: i32) -> (i32, i32, i32) {
    %c0_i32 = arith.constant 0 : i32
    %c0_i32_0 = arith.constant 0 : i32
    return %arg0, %c0_i32, %arg1 : i32, i32, i32
  }
  func.func @transform_4(%arg0: i32, %arg1: i32) -> (i32, i32, i32) {
    %c0_i32 = arith.constant 0 : i32
    %c0_i32_0 = arith.constant 0 : i32
    return %arg0, %c0_i32, %arg1 : i32, i32, i32
  }
  func.func @transform_5(%arg0: i32, %arg1: i32) -> (i32, i32, i32) {
    %c0_i32 = arith.constant 0 : i32
    %c0_i32_0 = arith.constant 0 : i32
    return %arg0, %c0_i32, %arg1 : i32, i32, i32
  }
  func.func @transform_6(%arg0: i32, %arg1: i32) -> (i32, i32, i32) {
    %c0_i32 = arith.constant 0 : i32
    %c0_i32_0 = arith.constant 0 : i32
    return %arg0, %c0_i32, %arg1 : i32, i32, i32
  }
  func.func @transform_7(%arg0: i32, %arg1: i32) -> (i32, i32, i32) {
    %c0_i32 = arith.constant 0 : i32
    %c0_i32_0 = arith.constant 0 : i32
    return %arg0, %c0_i32, %arg1 : i32, i32, i32
  }
  func.func @transform_8(%arg0: i32, %arg1: i32) -> (i32, i32, i32, i32) {
    %c0_i32 = arith.constant 0 : i32
    %c0_i32_0 = arith.constant 0 : i32
    %c0_i32_1 = arith.constant 0 : i32
    return %arg0, %c0_i32, %c0_i32_0, %arg1 : i32, i32, i32, i32
  }
}

</mosaic_0001>

<llo_original>
// kernel: tpu_custom_call.1
$region0: #{tpu_custom_call.1}
  #allocation0 [shape = 'u32[]', space=smem, size = 0x4, offset = 0x4, fixed_abs, tag = 'smem constant byte address 0x4 - core index']
  #allocation1 [shape = 'u32[144,128]{1,0:T(1,128)}', space=vmem, size = 0x12000, scoped, tag = 'internal scratch']
  %s0 = inlined_call_operand.hbm [shape: f32[2,4,256], index: 0, kind: input, shape index: {}]
  %s1 = inlined_call_operand.hbm [shape: f32[2,4,256], index: 1, kind: input, shape index: {}]
  %s2 = inlined_call_operand.hbm [shape: f32[2,4,256], index: 2, kind: input, shape index: {}]
  %s3 = inlined_call_operand.hbm [shape: f32[2,4,256], index: 3, kind: input, shape index: {}]
  %s4 = inlined_call_operand.hbm [shape: f32[2,4,256], index: 4, kind: input, shape index: {}]
  %s5 = inlined_call_operand.hbm [shape: f32[2,4,256], index: 5, kind: input, shape index: {}]
  %s6 = inlined_call_operand.hbm [shape: f32[2,4,256], index: 6, kind: input, shape index: {}]
  %s7 = inlined_call_operand.hbm [shape: f32[2,4,256], index: 7, kind: input, shape index: {}]
  %s8 = inlined_call_operand.hbm [shape: f32[2,4,4,256], index: 8, kind: output, shape index: {}]
  %s9 = sld [smem:[#allocation0]]
  $region97: #{tpu_custom_call.1} parent=0
    _
  %s11 = ssub.s32 1, %s9
  %s12 = scalar_select 0, %s11, %s9
  $region1: #{tpu_custom_call.1} parent=0
    #allocation2 [shape = 'u8[8192]{0}', space=vmem, size = 0x2000, scoped, tag = 'input window, operand 0']
    #allocation3 [shape = 's32[2]{0}', space=sflag, size = 0x8, scoped, tag = 'scoped memory for tpu_custom_call.1']
    #allocation4 [shape = 's32[2]{0}', space=sflag, size = 0x8, scoped, tag = 'scoped memory for tpu_custom_call.1']
    #allocation5 [shape = 'u8[8192]{0}', space=vmem, size = 0x2000, scoped, tag = 'input window, operand 1']
    #allocation6 [shape = 's32[2]{0}', space=sflag, size = 0x8, scoped, tag = 'scoped memory for tpu_custom_call.1']
    #allocation7 [shape = 'u8[8192]{0}', space=vmem, size = 0x2000, scoped, tag = 'input window, operand 2']
    #allocation8 [shape = 'u8[8192]{0}', space=vmem, size = 0x2000, scoped, tag = 'input window, operand 3']
    #allocation9 [shape = 's32[2]{0}', space=sflag, size = 0x8, scoped, tag = 'scoped memory for tpu_custom_call.1']
    #allocation10 [shape = 'u8[8192]{0}', space=vmem, size = 0x2000, scoped, tag = 'input window, operand 4']
    #allocation11 [shape = 'u8[8192]{0}', space=vmem, size = 0x2000, scoped, tag = 'input window, operand 5']
    #allocation12 [shape = 's32[2]{0}', space=sflag, size = 0x8, scoped, tag = 'scoped memory for tpu_custom_call.1']
    #allocation13 [shape = 'u8[8192]{0}', space=vmem, size = 0x2000, scoped, tag = 'input window, operand 6']
    #allocation14 [shape = 'u8[8192]{0}', space=vmem, size = 0x2000, scoped, tag = 'input window, operand 7']
    #allocation15 [shape = 's32[2]{0}', space=sflag, size = 0x8, scoped, tag = 'scoped memory for tpu_custom_call.1']
    #allocation16 [shape = 'u8[32768]{0}', space=vmem, size = 0x8000, scoped, tag = 'output window, operand 0']
    %13 = vsyncpa [#allocation3], 0
    %s14 = scalar_lea.sflag [#allocation3], 1
    %15 = vsyncpa %s14, 0
    %16 = vsyncpa [#allocation6], 0
    %s17 = scalar_lea.sflag [#allocation6], 1
    %18 = vsyncpa %s17, 0
    %19 = vsyncpa [#allocation9], 0
    %s20 = scalar_lea.sflag [#allocation9], 1
    %21 = vsyncpa %s20, 0
    %22 = vsyncpa [#allocation12], 0
    %s23 = scalar_lea.sflag [#allocation12], 1
    %24 = vsyncpa %s23, 0
    %25 = vsyncpa [#allocation15], 0
    %s26 = scalar_lea.sflag [#allocation15], 1
    %27 = vsyncpa %s26, 0
    %28 = vsyncpa [#allocation4], 0
    %s29 = scalar_lea.sflag [#allocation4], 1
    %30 = vsyncpa %s29, 0
    loop: start=0, step=1, limit=4
    $region2: #{tpu_custom_call.1} parent=1 // loop_pre_header
      _
    $region3: #{tpu_custom_call.1} parent=1 // loop_header
      %s32 = sphi 0, %s36
      %p33 = scmp.ge.s32.totalorder %s32, 4
      %s39 = sphi 0, %s51
      %s40 = sphi 0, %s47
      %s41 = sphi 0, %s39
      %s42 = sphi 0, %s40
      %s43 = sphi 0, %s41
      %s44 = sphi 0, %s42
      %s56 = sphi 0, %s58
      %s59 = sphi 0, %s56
      %s60 = sphi 0, %s59
      %s76 = sphi 0, %s60
      %s84 = sphi 0, %s86
      %s87 = sphi 0, %s84
      %s88 = sphi 0, %s87
      %s104 = sphi 0, %s88
      %s112 = sphi 0, %s114
      %s115 = sphi 0, %s112
      %s116 = sphi 0, %s115
      %s132 = sphi 0, %s116
      %s140 = sphi 0, %s142
      %s143 = sphi 0, %s140
      %s144 = sphi 0, %s143
      %s160 = sphi 0, %s144
      %s168 = sphi 0, %s170
      %s171 = sphi 0, %s168
      %s172 = sphi 0, %s171
      %s188 = sphi 0, %s172
      %s196 = sphi 0, %s198
      %s199 = sphi 0, %s196
      %s200 = sphi 0, %s199
      %s216 = sphi 0, %s200
      %s224 = sphi 0, %s226
      %s227 = sphi 0, %s224
      %s228 = sphi 0, %s227
      %s244 = sphi 0, %s228
      %s252 = sphi 0, %s254
      %s255 = sphi 0, %s252
      %s256 = sphi 0, %s255
      %s272 = sphi 0, %s256
      %s280 = sphi 0, %s282
      %s283 = sphi 0, %s280
      %s284 = sphi 0, %s283
      %s300 = sphi 0, %s284
    $region4: #{tpu_custom_call.1} parent=1 // loop_header_branch
      %35 = sbr.rel (%p33) target = $region8
    $region5: #{tpu_custom_call.1} parent=1 // loop_body
      %s37 = ssub.s32 %s32, 1
      %s38 = ssub.s32 %s32, 2
      %s45 = sadd.s32 1, %s40
      %p46 = scmp.ge.s32.totalorder %s45, 1
      %s47 = scalar_select %p46, 0, %s45
      %s48 = sadd.s32 1, %s39
      %s49 = scalar_select %p46, %s48, %s39
      %p50 = scmp.ge.s32.totalorder %s49, 2
      %s51 = scalar_select %p50, 0, %s49
      %s52 = ssub.s32 %s39, %s51
      %s53 = ssub.s32 %s40, %s47
      %s54 = sor.u32 %s52, %s53
      %p55 = scmp.eq.s32.totalorder %s54, 0
      %s57 = sadd.s32 %s56, 1
      %s58 = scalar_select %p55, %s56, %s57
      %p61 = pneg %p55
      %p62 = scmp.eq.s32.totalorder %s32, 1
      %p63 = por %p61, %p62
      %p64 = scmp.ne.s32.totalorder %s56, %s59
      %p65 = scmp.eq.s32.totalorder %s32, 0
      %p66 = por %p64, %p65
      %p67 = scmp.ne.s32.totalorder %s56, %s59
      %p68 = scmp.eq.s32.totalorder %s37, 1
      %p69 = por %p67, %p68
      %p70 = scmp.ne.s32.totalorder %s59, %s60
      %p71 = scmp.eq.s32.totalorder %s37, 0
      %p72 = por %p70, %p71
      %p73 = scmp.ne.s32.totalorder %s59, %s60
      %p74 = scmp.eq.s32.totalorder %s38, 1
      %p75 = por %p73, %p74
      %p77 = scmp.ne.s32.totalorder %s60, %s76
      %p78 = scmp.eq.s32.totalorder %s38, 0
      %p79 = por %p77, %p78
      %s80 = ssub.s32 %s39, %s51
      %s81 = ssub.s32 %s40, %s47
      %s82 = sor.u32 %s80, %s81
      %p83 = scmp.eq.s32.totalorder %s82, 0
      %s85 = sadd.s32 %s84, 1
      %s86 = scalar_select %p83, %s84, %s85
      %p89 = pneg %p83
      %p90 = scmp.eq.s32.totalorder %s32, 1
      %p91 = por %p89, %p90
      %p92 = scmp.ne.s32.totalorder %s84, %s87
      %p93 = scmp.eq.s32.totalorder %s32, 0
      %p94 = por %p92, %p93
      %p95 = scmp.ne.s32.totalorder %s84, %s87
      %p96 = scmp.eq.s32.totalorder %s37, 1
      %p97 = por %p95, %p96
      %p98 = scmp.ne.s32.totalorder %s87, %s88
      %p99 = scmp.eq.s32.totalorder %s37, 0
      %p100 = por %p98, %p99
      %p101 = scmp.ne.s32.totalorder %s87, %s88
      %p102 = scmp.eq.s32.totalorder %s38, 1
      %p103 = por %p101, %p102
      %p105 = scmp.ne.s32.totalorder %s88, %s104
      %p106 = scmp.eq.s32.totalorder %s38, 0
      %p107 = por %p105, %p106
      %s108 = ssub.s32 %s39, %s51
      %s109 = ssub.s32 %s40, %s47
      %s110 = sor.u32 %s108, %s109
      %p111 = scmp.eq.s32.totalorder %s110, 0
      %s113 = sadd.s32 %s112, 1
      %s114 = scalar_select %p111, %s112, %s113
      %p117 = pneg %p111
      %p118 = scmp.eq.s32.totalorder %s32, 1
      %p119 = por %p117, %p118
      %p120 = scmp.ne.s32.totalorder %s112, %s115
      %p121 = scmp.eq.s32.totalorder %s32, 0
      %p122 = por %p120, %p121
      %p123 = scmp.ne.s32.totalorder %s112, %s115
      %p124 = scmp.eq.s32.totalorder %s37, 1
      %p125 = por %p123, %p124
      %p126 = scmp.ne.s32.totalorder %s115, %s116
      %p127 = scmp.eq.s32.totalorder %s37, 0
      %p128 = por %p126, %p127
      %p129 = scmp.ne.s32.totalorder %s115, %s116
      %p130 = scmp.eq.s32.totalorder %s38, 1
      %p131 = por %p129, %p130
      %p133 = scmp.ne.s32.totalorder %s116, %s132
      %p134 = scmp.eq.s32.totalorder %s38, 0
      %p135 = por %p133, %p134
      %s136 = ssub.s32 %s39, %s51
      %s137 = ssub.s32 %s40, %s47
      %s138 = sor.u32 %s136, %s137
      %p139 = scmp.eq.s32.totalorder %s138, 0
      %s141 = sadd.s32 %s140, 1
      %s142 = scalar_select %p139, %s140, %s141
      %p145 = pneg %p139
      %p146 = scmp.eq.s32.totalorder %s32, 1
      %p147 = por %p145, %p146
      %p148 = scmp.ne.s32.totalorder %s140, %s143
      %p149 = scmp.eq.s32.totalorder %s32, 0
      %p150 = por %p148, %p149
      %p151 = scmp.ne.s32.totalorder %s140, %s143
      %p152 = scmp.eq.s32.totalorder %s37, 1
      %p153 = por %p151, %p152
      %p154 = scmp.ne.s32.totalorder %s143, %s144
      %p155 = scmp.eq.s32.totalorder %s37, 0
      %p156 = por %p154, %p155
      %p157 = scmp.ne.s32.totalorder %s143, %s144
      %p158 = scmp.eq.s32.totalorder %s38, 1
      %p159 = por %p157, %p158
      %p161 = scmp.ne.s32.totalorder %s144, %s160
      %p162 = scmp.eq.s32.totalorder %s38, 0
      %p163 = por %p161, %p162
      %s164 = ssub.s32 %s39, %s51
      %s165 = ssub.s32 %s40, %s47
      %s166 = sor.u32 %s164, %s165
      %p167 = scmp.eq.s32.totalorder %s166, 0
      %s169 = sadd.s32 %s168, 1
      %s170 = scalar_select %p167, %s168, %s169
      %p173 = pneg %p167
      %p174 = scmp.eq.s32.totalorder %s32, 1
      %p175 = por %p173, %p174
      %p176 = scmp.ne.s32.totalorder %s168, %s171
      %p177 = scmp.eq.s32.totalorder %s32, 0
      %p178 = por %p176, %p177
      %p179 = scmp.ne.s32.totalorder %s168, %s171
      %p180 = scmp.eq.s32.totalorder %s37, 1
      %p181 = por %p179, %p180
      %p182 = scmp.ne.s32.totalorder %s171, %s172
      %p183 = scmp.eq.s32.totalorder %s37, 0
      %p184 = por %p182, %p183
      %p185 = scmp.ne.s32.totalorder %s171, %s172
      %p186 = scmp.eq.s32.totalorder %s38, 1
      %p187 = por %p185, %p186
      %p189 = scmp.ne.s32.totalorder %s172, %s188
      %p190 = scmp.eq.s32.totalorder %s38, 0
      %p191 = por %p189, %p190
      %s192 = ssub.s32 %s39, %s51
      %s193 = ssub.s32 %s40, %s47
      %s194 = sor.u32 %s192, %s193
      %p195 = scmp.eq.s32.totalorder %s194, 0
      %s197 = sadd.s32 %s196, 1
      %s198 = scalar_select %p195, %s196, %s197
      %p201 = pneg %p195
      %p202 = scmp.eq.s32.totalorder %s32, 1
      %p203 = por %p201, %p202
      %p204 = scmp.ne.s32.totalorder %s196, %s199
      %p205 = scmp.eq.s32.totalorder %s32, 0
      %p206 = por %p204, %p205
      %p207 = scmp.ne.s32.totalorder %s196, %s199
      %p208 = scmp.eq.s32.totalorder %s37, 1
      %p209 = por %p207, %p208
      %p210 = scmp.ne.s32.totalorder %s199, %s200
      %p211 = scmp.eq.s32.totalorder %s37, 0
      %p212 = por %p210, %p211
      %p213 = scmp.ne.s32.totalorder %s199, %s200
      %p214 = scmp.eq.s32.totalorder %s38, 1
      %p215 = por %p213, %p214
      %p217 = scmp.ne.s32.totalorder %s200, %s216
      %p218 = scmp.eq.s32.totalorder %s38, 0
      %p219 = por %p217, %p218
      %s220 = ssub.s32 %s39, %s51
      %s221 = ssub.s32 %s40, %s47
      %s222 = sor.u32 %s220, %s221
      %p223 = scmp.eq.s32.totalorder %s222, 0
      %s225 = sadd.s32 %s224, 1
      %s226 = scalar_select %p223, %s224, %s225
      %p229 = pneg %p223
      %p230 = scmp.eq.s32.totalorder %s32, 1
      %p231 = por %p229, %p230
      %p232 = scmp.ne.s32.totalorder %s224, %s227
      %p233 = scmp.eq.s32.totalorder %s32, 0
      %p234 = por %p232, %p233
      %p235 = scmp.ne.s32.totalorder %s224, %s227
      %p236 = scmp.eq.s32.totalorder %s37, 1
      %p237 = por %p235, %p236
      %p238 = scmp.ne.s32.totalorder %s227, %s228
      %p239 = scmp.eq.s32.totalorder %s37, 0
      %p240 = por %p238, %p239
      %p241 = scmp.ne.s32.totalorder %s227, %s228
      %p242 = scmp.eq.s32.totalorder %s38, 1
      %p243 = por %p241, %p242
      %p245 = scmp.ne.s32.totalorder %s228, %s244
      %p246 = scmp.eq.s32.totalorder %s38, 0
      %p247 = por %p245, %p246
      %s248 = ssub.s32 %s39, %s51
      %s249 = ssub.s32 %s40, %s47
      %s250 = sor.u32 %s248, %s249
      %p251 = scmp.eq.s32.totalorder %s250, 0
      %s253 = sadd.s32 %s252, 1
      %s254 = scalar_select %p251, %s252, %s253
      %p257 = pneg %p251
      %p258 = scmp.eq.s32.totalorder %s32, 1
      %p259 = por %p257, %p258
      %p260 = scmp.ne.s32.totalorder %s252, %s255
      %p261 = scmp.eq.s32.totalorder %s32, 0
      %p262 = por %p260, %p261
      %p263 = scmp.ne.s32.totalorder %s252, %s255
      %p264 = scmp.eq.s32.totalorder %s37, 1
      %p265 = por %p263, %p264
      %p266 = scmp.ne.s32.totalorder %s255, %s256
      %p267 = scmp.eq.s32.totalorder %s37, 0
      %p268 = por %p266, %p267
      %p269 = scmp.ne.s32.totalorder %s255, %s256
      %p270 = scmp.eq.s32.totalorder %s38, 1
      %p271 = por %p269, %p270
      %p273 = scmp.ne.s32.totalorder %s256, %s272
      %p274 = scmp.eq.s32.totalorder %s38, 0
      %p275 = por %p273, %p274
      %s276 = ssub.s32 %s39, %s51
      %s277 = ssub.s32 %s40, %s47
      %s278 = sor.u32 %s276, %s277
      %p279 = scmp.eq.s32.totalorder %s278, 0
      %s281 = sadd.s32 %s280, 1
      %s282 = scalar_select %p279, %s280, %s281
      %p285 = pneg %p279
      %p286 = scmp.eq.s32.totalorder %s32, 1
      %p287 = por %p285, %p286
      %p288 = scmp.ne.s32.totalorder %s280, %s283
      %p289 = scmp.eq.s32.totalorder %s32, 0
      %p290 = por %p288, %p289
      %p291 = scmp.ne.s32.totalorder %s280, %s283
      %p292 = scmp.eq.s32.totalorder %s37, 1
      %p293 = por %p291, %p292
      %p294 = scmp.ne.s32.totalorder %s283, %s284
      %p295 = scmp.eq.s32.totalorder %s37, 0
      %p296 = por %p294, %p295
      %p297 = scmp.ne.s32.totalorder %s283, %s284
      %p298 = scmp.eq.s32.totalorder %s38, 1
      %p299 = por %p297, %p298
      %p301 = scmp.ne.s32.totalorder %s284, %s300
      %p302 = scmp.eq.s32.totalorder %s38, 0
      %p303 = por %p301, %p302
      %p304 = scmp.le.s32.totalorder 1, %s32
      %p305 = scmp.lt.s32.totalorder %s32, 3
      %p306 = pnand %p304, %p305
      %p307 = pneg %p306
      // Predicated region
      $region9: #{tpu_custom_call.1} parent=5 // pred_check
        _
      $region10: #{tpu_custom_call.1} parent=5 // pred_check_branch
        %309 = sbr.rel (%p306) target = $region12
      $region11: #{tpu_custom_call.1} parent=5 // pred_region
        %s310 = ssub.s32 %s32, 1
      $region12: #{tpu_custom_call.1} parent=5 // pred_fallthru
        _
      %p311 = scmp.lt.s32.totalorder %s32, 2
      // Predicated region
      $region13: #{tpu_custom_call.1} parent=5 // pred_check
        %p312 = pneg %p311
      $region14: #{tpu_custom_call.1} parent=5 // pred_check_branch
        %314 = sbr.rel (%p312) target = $region16
      $region15: #{tpu_custom_call.1} parent=5 // pred_region
        // Predicated region
        $region17: #{tpu_custom_call.1} parent=15 // pred_check
          %p315 = pneg %p66
        $region18: #{tpu_custom_call.1} parent=15 // pred_check_branch
          %317 = sbr.rel (%p315) target = $region20
        $region19: #{tpu_custom_call.1} parent=15 // pred_region
          %s318 = sand.u32 %s56, 1
          %s319 = scalar_lea.sflag [#allocation3], %s318
          %s320 = sand.u32 %s56, 1
          %s321 = smul.addr %s320, 8
          %s322 = scalar_lea.vmem [#allocation2], %s321
          %s323 = smul.u32 2, %s40
          %s325 = ssub.s32 128, 128
          %326 = vsyncadd %s319, %s325
          %s327 = smul.addr %s39, 2
          %s328 = sadd.s32 %s323, %s327
          %s329 = smul.addr %s328, 64
          %s330 = scalar_lea.hbm %s0, %s329
          %s332 = sshll.u32 %s322, 4
          %s333 = int_to_ptr.vmem [resolvable:$true] %s332
          %335 = dma.hbm_to_vmem [thread:$0]  %s330, 128, %s333, %s319
        $region20: #{tpu_custom_call.1} parent=15 // pred_fallthru
          _
        // Predicated region
        $region21: #{tpu_custom_call.1} parent=15 // pred_check
          %p336 = pneg %p94
        $region22: #{tpu_custom_call.1} parent=15 // pred_check_branch
          %338 = sbr.rel (%p336) target = $region24
        $region23: #{tpu_custom_call.1} parent=15 // pred_region
          %s339 = sand.u32 %s32, 1
          %s340 = scalar_lea.sflag [#allocation6], %s339
          %s341 = sand.u32 %s84, 1
          %s342 = smul.addr %s341, 8
          %s343 = scalar_lea.vmem [#allocation5], %s342
          %s344 = smul.u32 2, %s40
          %s346 = ssub.s32 128, 128
          %347 = vsyncadd %s340, %s346
          %s348 = smul.addr %s39, 2
          %s349 = sadd.s32 %s344, %s348
          %s350 = smul.addr %s349, 64
          %s351 = scalar_lea.hbm %s1, %s350
          %s353 = sshll.u32 %s343, 4
          %s354 = int_to_ptr.vmem [resolvable:$true] %s353
          %356 = dma.hbm_to_vmem [thread:$0]  %s351, 128, %s354, %s340
        $region24: #{tpu_custom_call.1} parent=15 // pred_fallthru
          _
        // Predicated region
        $region25: #{tpu_custom_call.1} parent=15 // pred_check
          %p357 = pneg %p122
        $region26: #{tpu_custom_call.1} parent=15 // pred_check_branch
          %359 = sbr.rel (%p357) target = $region28
        $region27: #{tpu_custom_call.1} parent=15 // pred_region
          %s360 = sand.u32 %s32, 1
          %s361 = scalar_lea.sflag [#allocation6], %s360
          %s362 = sand.u32 %s112, 1
          %s363 = smul.addr %s362, 8
          %s364 = scalar_lea.vmem [#allocation7], %s363
          %s365 = smul.u32 2, %s40
          %s367 = ssub.s32 128, 128
          %368 = vsyncadd %s361, %s367
          %s369 = smul.addr %s39, 2
          %s370 = sadd.s32 %s365, %s369
          %s371 = smul.addr %s370, 64
          %s372 = scalar_lea.hbm %s2, %s371
          %s374 = sshll.u32 %s364, 4
          %s375 = int_to_ptr.vmem [resolvable:$true] %s374
          %377 = dma.hbm_to_vmem [thread:$0]  %s372, 128, %s375, %s361
        $region28: #{tpu_custom_call.1} parent=15 // pred_fallthru
          _
        // Predicated region
        $region29: #{tpu_custom_call.1} parent=15 // pred_check
          %p378 = pneg %p150
        $region30: #{tpu_custom_call.1} parent=15 // pred_check_branch
          %380 = sbr.rel (%p378) target = $region32
        $region31: #{tpu_custom_call.1} parent=15 // pred_region
          %s381 = sand.u32 %s32, 1
          %s382 = scalar_lea.sflag [#allocation9], %s381
          %s383 = sand.u32 %s140, 1
          %s384 = smul.addr %s383, 8
          %s385 = scalar_lea.vmem [#allocation8], %s384
          %s386 = smul.u32 2, %s40
          %s388 = ssub.s32 128, 128
          %389 = vsyncadd %s382, %s388
          %s390 = smul.addr %s39, 2
          %s391 = sadd.s32 %s386, %s390
          %s392 = smul.addr %s391, 64
          %s393 = scalar_lea.hbm %s3, %s392
          %s395 = sshll.u32 %s385, 4
          %s396 = int_to_ptr.vmem [resolvable:$true] %s395
          %398 = dma.hbm_to_vmem [thread:$0]  %s393, 128, %s396, %s382
        $region32: #{tpu_custom_call.1} parent=15 // pred_fallthru
          _
        // Predicated region
        $region33: #{tpu_custom_call.1} parent=15 // pred_check
          %p399 = pneg %p178
        $region34: #{tpu_custom_call.1} parent=15 // pred_check_branch
          %401 = sbr.rel (%p399) target = $region36
        $region35: #{tpu_custom_call.1} parent=15 // pred_region
          %s402 = sand.u32 %s32, 1
          %s403 = scalar_lea.sflag [#allocation9], %s402
          %s404 = sand.u32 %s168, 1
          %s405 = smul.addr %s404, 8
          %s406 = scalar_lea.vmem [#allocation10], %s405
          %s407 = smul.u32 2, %s40
          %s409 = ssub.s32 128, 128
          %410 = vsyncadd %s403, %s409
          %s411 = smul.addr %s39, 2
          %s412 = sadd.s32 %s407, %s411
          %s413 = smul.addr %s412, 64
          %s414 = scalar_lea.hbm %s4, %s413
          %s416 = sshll.u32 %s406, 4
          %s417 = int_to_ptr.vmem [resolvable:$true] %s416
          %419 = dma.hbm_to_vmem [thread:$0]  %s414, 128, %s417, %s403
        $region36: #{tpu_custom_call.1} parent=15 // pred_fallthru
          _
        // Predicated region
        $region37: #{tpu_custom_call.1} parent=15 // pred_check
          %p420 = pneg %p206
        $region38: #{tpu_custom_call.1} parent=15 // pred_check_branch
          %422 = sbr.rel (%p420) target = $region40
        $region39: #{tpu_custom_call.1} parent=15 // pred_region
          %s423 = sand.u32 %s32, 1
          %s424 = scalar_lea.sflag [#allocation12], %s423
          %s425 = sand.u32 %s196, 1
          %s426 = smul.addr %s425, 8
          %s427 = scalar_lea.vmem [#allocation11], %s426
          %s428 = smul.u32 2, %s40
          %s430 = ssub.s32 128, 128
          %431 = vsyncadd %s424, %s430
          %s432 = smul.addr %s39, 2
          %s433 = sadd.s32 %s428, %s432
          %s434 = smul.addr %s433, 64
          %s435 = scalar_lea.hbm %s5, %s434
          %s437 = sshll.u32 %s427, 4
          %s438 = int_to_ptr.vmem [resolvable:$true] %s437
          %440 = dma.hbm_to_vmem [thread:$0]  %s435, 128, %s438, %s424
        $region40: #{tpu_custom_call.1} parent=15 // pred_fallthru
          _
        // Predicated region
        $region41: #{tpu_custom_call.1} parent=15 // pred_check
          %p441 = pneg %p234
        $region42: #{tpu_custom_call.1} parent=15 // pred_check_branch
          %443 = sbr.rel (%p441) target = $region44
        $region43: #{tpu_custom_call.1} parent=15 // pred_region
          %s444 = sand.u32 %s32, 1
          %s445 = scalar_lea.sflag [#allocation12], %s444
          %s446 = sand.u32 %s224, 1
          %s447 = smul.addr %s446, 8
          %s448 = scalar_lea.vmem [#allocation13], %s447
          %s449 = smul.u32 2, %s40
          %s451 = ssub.s32 128, 128
          %452 = vsyncadd %s445, %s451
          %s453 = smul.addr %s39, 2
          %s454 = sadd.s32 %s449, %s453
          %s455 = smul.addr %s454, 64
          %s456 = scalar_lea.hbm %s6, %s455
          %s458 = sshll.u32 %s448, 4
          %s459 = int_to_ptr.vmem [resolvable:$true] %s458
          %461 = dma.hbm_to_vmem [thread:$0]  %s456, 128, %s459, %s445
        $region44: #{tpu_custom_call.1} parent=15 // pred_fallthru
          _
        // Predicated region
        $region45: #{tpu_custom_call.1} parent=15 // pred_check
          %p462 = pneg %p262
        $region46: #{tpu_custom_call.1} parent=15 // pred_check_branch
          %464 = sbr.rel (%p462) target = $region48
        $region47: #{tpu_custom_call.1} parent=15 // pred_region
          %s465 = sand.u32 %s252, 1
          %s466 = scalar_lea.sflag [#allocation15], %s465
          %s467 = sand.u32 %s252, 1
          %s468 = smul.addr %s467, 8
          %s469 = scalar_lea.vmem [#allocation14], %s468
          %s470 = smul.u32 2, %s40
          %s472 = ssub.s32 128, 128
          %473 = vsyncadd %s466, %s472
          %s474 = smul.addr %s39, 2
          %s475 = sadd.s32 %s470, %s474
          %s476 = smul.addr %s475, 64
          %s477 = scalar_lea.hbm %s7, %s476
          %s479 = sshll.u32 %s469, 4
          %s480 = int_to_ptr.vmem [resolvable:$true] %s479
          %482 = dma.hbm_to_vmem [thread:$0]  %s477, 128, %s480, %s466
        $region48: #{tpu_custom_call.1} parent=15 // pred_fallthru
          _
      $region16: #{tpu_custom_call.1} parent=5 // pred_fallthru
        _
      %p483 = scmp.le.s32.totalorder 1, %s32
      %p484 = scmp.lt.s32.totalorder %s32, 3
      %p485 = pnand %p483, %p484
      %p486 = pneg %p485
      // Predicated region
      $region49: #{tpu_custom_call.1} parent=5 // pred_check
        _
      $region50: #{tpu_custom_call.1} parent=5 // pred_check_branch
        %488 = sbr.rel (%p485) target = $region52
      $region51: #{tpu_custom_call.1} parent=5 // pred_region
        %s489 = ssub.s32 %s32, 1
        %s490 = sand.u32 %s59, 1
        %s491 = scalar_lea.sflag [#allocation3], %s490
        %s492 = sand.u32 %s59, 1
        %s493 = smul.addr %s492, 8
        %s494 = scalar_lea.vmem [#allocation2], %s493
        // Predicated region
        $region53: #{tpu_custom_call.1} parent=51 // pred_check
          %p495 = pneg %p72
        $region54: #{tpu_custom_call.1} parent=51 // pred_check_branch
          %497 = sbr.rel (%p495) target = $region56
        $region55: #{tpu_custom_call.1} parent=51 // pred_region
          %498 = dma.done %s491, 128
        $region56: #{tpu_custom_call.1} parent=51 // pred_fallthru
          _
        %s499 = sand.u32 %s37, 1
        %s500 = scalar_lea.sflag [#allocation6], %s499
        %s501 = sand.u32 %s87, 1
        %s502 = smul.addr %s501, 8
        %s503 = scalar_lea.vmem [#allocation5], %s502
        // Predicated region
        $region57: #{tpu_custom_call.1} parent=51 // pred_check
          %p504 = pneg %p100
        $region58: #{tpu_custom_call.1} parent=51 // pred_check_branch
          %506 = sbr.rel (%p504) target = $region60
        $region59: #{tpu_custom_call.1} parent=51 // pred_region
          %507 = dma.done %s500, 128
        $region60: #{tpu_custom_call.1} parent=51 // pred_fallthru
          _
        %s508 = sand.u32 %s37, 1
        %s509 = scalar_lea.sflag [#allocation6], %s508
        %s510 = sand.u32 %s115, 1
        %s511 = smul.addr %s510, 8
        %s512 = scalar_lea.vmem [#allocation7], %s511
        // Predicated region
        $region61: #{tpu_custom_call.1} parent=51 // pred_check
          %p513 = pneg %p128
        $region62: #{tpu_custom_call.1} parent=51 // pred_check_branch
          %515 = sbr.rel (%p513) target = $region64
        $region63: #{tpu_custom_call.1} parent=51 // pred_region
          %516 = dma.done %s509, 128
        $region64: #{tpu_custom_call.1} parent=51 // pred_fallthru
          _
        %s517 = sand.u32 %s37, 1
        %s518 = scalar_lea.sflag [#allocation9], %s517
        %s519 = sand.u32 %s143, 1
        %s520 = smul.addr %s519, 8
        %s521 = scalar_lea.vmem [#allocation8], %s520
        // Predicated region
        $region65: #{tpu_custom_call.1} parent=51 // pred_check
          %p522 = pneg %p156
        $region66: #{tpu_custom_call.1} parent=51 // pred_check_branch
          %524 = sbr.rel (%p522) target = $region68
        $region67: #{tpu_custom_call.1} parent=51 // pred_region
          %525 = dma.done %s518, 128
        $region68: #{tpu_custom_call.1} parent=51 // pred_fallthru
          _
        %s526 = sand.u32 %s37, 1
        %s527 = scalar_lea.sflag [#allocation9], %s526
        %s528 = sand.u32 %s171, 1
        %s529 = smul.addr %s528, 8
        %s530 = scalar_lea.vmem [#allocation10], %s529
        // Predicated region
        $region69: #{tpu_custom_call.1} parent=51 // pred_check
          %p531 = pneg %p184
        $region70: #{tpu_custom_call.1} parent=51 // pred_check_branch
          %533 = sbr.rel (%p531) target = $region72
        $region71: #{tpu_custom_call.1} parent=51 // pred_region
          %534 = dma.done %s527, 128
        $region72: #{tpu_custom_call.1} parent=51 // pred_fallthru
          _
        %s535 = sand.u32 %s37, 1
        %s536 = scalar_lea.sflag [#allocation12], %s535
        %s537 = sand.u32 %s199, 1
        %s538 = smul.addr %s537, 8
        %s539 = scalar_lea.vmem [#allocation11], %s538
        // Predicated region
        $region73: #{tpu_custom_call.1} parent=51 // pred_check
          %p540 = pneg %p212
        $region74: #{tpu_custom_call.1} parent=51 // pred_check_branch
          %542 = sbr.rel (%p540) target = $region76
        $region75: #{tpu_custom_call.1} parent=51 // pred_region
          %543 = dma.done %s536, 128
        $region76: #{tpu_custom_call.1} parent=51 // pred_fallthru
          _
        %s544 = sand.u32 %s37, 1
        %s545 = scalar_lea.sflag [#allocation12], %s544
        %s546 = sand.u32 %s227, 1
        %s547 = smul.addr %s546, 8
        %s548 = scalar_lea.vmem [#allocation13], %s547
        // Predicated region
        $region77: #{tpu_custom_call.1} parent=51 // pred_check
          %p549 = pneg %p240
        $region78: #{tpu_custom_call.1} parent=51 // pred_check_branch
          %551 = sbr.rel (%p549) target = $region80
        $region79: #{tpu_custom_call.1} parent=51 // pred_region
          %552 = dma.done %s545, 128
        $region80: #{tpu_custom_call.1} parent=51 // pred_fallthru
          _
        %s553 = sand.u32 %s255, 1
        %s554 = scalar_lea.sflag [#allocation15], %s553
        %s555 = sand.u32 %s255, 1
        %s556 = smul.addr %s555, 8
        %s557 = scalar_lea.vmem [#allocation14], %s556
        // Predicated region
        $region81: #{tpu_custom_call.1} parent=51 // pred_check
          %p558 = pneg %p268
        $region82: #{tpu_custom_call.1} parent=51 // pred_check_branch
          %560 = sbr.rel (%p558) target = $region84
        $region83: #{tpu_custom_call.1} parent=51 // pred_region
          %561 = dma.done %s554, 128
        $region84: #{tpu_custom_call.1} parent=51 // pred_fallthru
          _
        %s562 = sand.u32 %s59, 1
        %s563 = scalar_lea.sflag [#allocation3], %s562
        %s564 = sand.u32 %s59, 1
        %s565 = smul.addr %s564, 8
        %s566 = scalar_lea.vmem [#allocation2], %s565
        %p567 = pneg %p72
        %p568 = pneg %p69
        %s569 = sand.u32 %s37, 1
        %s570 = scalar_lea.sflag [#allocation6], %s569
        %s571 = sand.u32 %s87, 1
        %s572 = smul.addr %s571, 8
        %s573 = scalar_lea.vmem [#allocation5], %s572
        %p574 = pneg %p100
        %p575 = pneg %p97
        %s576 = sand.u32 %s37, 1
        %s577 = scalar_lea.sflag [#allocation6], %s576
        %s578 = sand.u32 %s115, 1
        %s579 = smul.addr %s578, 8
        %s580 = scalar_lea.vmem [#allocation7], %s579
        %p581 = pneg %p128
        %p582 = pneg %p125
        %s583 = sand.u32 %s37, 1
        %s584 = scalar_lea.sflag [#allocation9], %s583
        %s585 = sand.u32 %s143, 1
        %s586 = smul.addr %s585, 8
        %s587 = scalar_lea.vmem [#allocation8], %s586
        %p588 = pneg %p156
        %p589 = pneg %p153
        %s590 = sand.u32 %s37, 1
        %s591 = scalar_lea.sflag [#allocation9], %s590
        %s592 = sand.u32 %s171, 1
        %s593 = smul.addr %s592, 8
        %s594 = scalar_lea.vmem [#allocation10], %s593
        %p595 = pneg %p184
        %p596 = pneg %p181
        %s597 = sand.u32 %s37, 1
        %s598 = scalar_lea.sflag [#allocation12], %s597
        %s599 = sand.u32 %s199, 1
        %s600 = smul.addr %s599, 8
        %s601 = scalar_lea.vmem [#allocation11], %s600
        %p602 = pneg %p212
        %p603 = pneg %p209
        %s604 = sand.u32 %s37, 1
        %s605 = scalar_lea.sflag [#allocation12], %s604
        %s606 = sand.u32 %s227, 1
        %s607 = smul.addr %s606, 8
        %s608 = scalar_lea.vmem [#allocation13], %s607
        %p609 = pneg %p240
        %p610 = pneg %p237
        %s611 = sand.u32 %s255, 1
        %s612 = scalar_lea.sflag [#allocation15], %s611
        %s613 = sand.u32 %s255, 1
        %s614 = smul.addr %s613, 8
        %s615 = scalar_lea.vmem [#allocation14], %s614
        %p616 = pneg %p268
        %p617 = pneg %p265
        %p618 = pneg %p296
        %p619 = pneg %p293
        %s620 = sand.u32 %s283, 1
        %s621 = scalar_lea.sflag [#allocation4], %s620
        %s622 = sand.u32 %s283, 1
        %s623 = smul.addr %s622, 32
        %s624 = scalar_lea.vmem [#allocation16], %s623
        %s625 = smul.u32 2, %s42
        %s626 = smul.u32 2, %s42
        %s627 = smul.u32 2, %s42
        %s628 = smul.u32 2, %s42
        %s629 = smul.u32 2, %s42
        %s630 = smul.u32 2, %s42
        %s631 = smul.u32 2, %s42
        %s632 = smul.u32 2, %s42
        %s633 = smul.u32 2, %s42
        %v634 = vld [vmem:[%s494] sm:$0xff]
        %v635 = vld [vmem:[%s530] sm:$0xff]
        %v636 = vadd.f32 %v634, %v635
        %v637 = vld [vmem:[%s503] sm:$0xff]
        %v638 = vld [vmem:[%s539] sm:$0xff]
        %v639 = vadd.f32 %v637, %v638
        %v640 = vld [vmem:[%s512] sm:$0xff]
        %v641 = vld [vmem:[%s548] sm:$0xff]
        %v642 = vadd.f32 %v640, %v641
        %v643 = vld [vmem:[%s521] sm:$0xff]
        %v644 = vld [vmem:[%s557] sm:$0xff]
        %v645 = vadd.f32 %v643, %v644
        %646 = vst [vmem:[%s624] sm:$0xff] %v636
        %s647 = scalar_lea.vmem %s624, 8 [#allocation16]
        %648 = vst [vmem:[%s647] sm:$0xff] %v639
        %s649 = scalar_lea.vmem %s624, 16 [#allocation16]
        %650 = vst [vmem:[%s649] sm:$0xff] %v642
        %s651 = scalar_lea.vmem %s624, 24 [#allocation16]
        %652 = vst [vmem:[%s651] sm:$0xff] %v645
        %s653 = sand.u32 %s283, 1
        %s654 = scalar_lea.sflag [#allocation4], %s653
        %s655 = sand.u32 %s283, 1
        %s656 = smul.addr %s655, 32
        %s657 = scalar_lea.vmem [#allocation16], %s656
        // Predicated region
        $region85: #{tpu_custom_call.1} parent=51 // pred_check
          %p658 = pneg %p293
        $region86: #{tpu_custom_call.1} parent=51 // pred_check_branch
          %660 = sbr.rel (%p658) target = $region88
        $region87: #{tpu_custom_call.1} parent=51 // pred_region
          %s661 = smul.u32 2, %s42
          %s663 = ssub.s32 512, 512
          %664 = vsyncadd %s654, %s663
          %s665 = smul.addr %s41, 8
          %s666 = sadd.s32 %s661, %s665
          %s667 = smul.addr %s666, 64
          %s668 = scalar_lea.hbm %s8, %s667
          %s669 = sshll.u32 %s657, 4
          %s670 = int_to_ptr.vmem [resolvable:$true] %s669
          %675 = dma.vmem_to_hbm [thread:$0]  %s670, 512, %s668, %s654, 128, 128, 8
        $region88: #{tpu_custom_call.1} parent=51 // pred_fallthru
          _
      $region52: #{tpu_custom_call.1} parent=5 // pred_fallthru
        _
      %p676 = scmp.le.s32.totalorder 2, %s32
      // Predicated region
      $region89: #{tpu_custom_call.1} parent=5 // pred_check
        %p677 = pneg %p676
      $region90: #{tpu_custom_call.1} parent=5 // pred_check_branch
        %679 = sbr.rel (%p677) target = $region92
      $region91: #{tpu_custom_call.1} parent=5 // pred_region
        %s680 = ssub.s32 %s32, 2
        // Predicated region
        $region93: #{tpu_custom_call.1} parent=91 // pred_check
          %p681 = pneg %p299
        $region94: #{tpu_custom_call.1} parent=91 // pred_check_branch
          %683 = sbr.rel (%p681) target = $region96
        $region95: #{tpu_custom_call.1} parent=91 // pred_region
          %s684 = sand.u32 %s284, 1
          %s685 = scalar_lea.sflag [#allocation4], %s684
          %s686 = sand.u32 %s284, 1
          %s687 = smul.addr %s686, 32
          %s688 = scalar_lea.vmem [#allocation16], %s687
          %689 = dma.done %s685, 512
        $region96: #{tpu_custom_call.1} parent=91 // pred_fallthru
          _
      $region92: #{tpu_custom_call.1} parent=5 // pred_fallthru
        _
    $region6: #{tpu_custom_call.1} parent=1 // loop_footer
      %s36 = sadd.s32 1, %s32
    $region7: #{tpu_custom_call.1} parent=1 // loop_footer_branch
      %31 = sbr.rel target = $region3
    $region8: #{tpu_custom_call.1} parent=1 // loop_exit
      _
    %690 = vsyncpa [#allocation3], 1
    %s691 = scalar_lea.sflag [#allocation3], 1
    %692 = vsyncpa %s691, 1
    %693 = vsyncpa [#allocation6], 1
    %s694 = scalar_lea.sflag [#allocation6], 1
    %695 = vsyncpa %s694, 1
    %696 = vsyncpa [#allocation9], 1
    %s697 = scalar_lea.sflag [#allocation9], 1
    %698 = vsyncpa %s697, 1
    %699 = vsyncpa [#allocation12], 1
    %s700 = scalar_lea.sflag [#allocation12], 1
    %701 = vsyncpa %s700, 1
    %702 = vsyncpa [#allocation15], 1
    %s703 = scalar_lea.sflag [#allocation15], 1
    %704 = vsyncpa %s703, 1
    %705 = vsyncpa [#allocation4], 1
    %s706 = scalar_lea.sflag [#allocation4], 1
    %707 = vsyncpa %s706, 1

</llo_original>
